<compile_context>
chip_gen: v7x
topology: tpu7x:2x2x1
jax: 0.10.0
libtpu: 0.0.40
codegen_flags: <defaults>
</compile_context>

<pallas_src>
import jax
import jax.numpy as jnp
from jax import lax
from jax.experimental import pallas as pl
from jax.experimental.pallas import tpu as pltpu


# ----------------------------------------------------------------------------
# Generation-aware tiling / VMEM planning
# ----------------------------------------------------------------------------
def _tpu_vmem_bytes():
    """Physical VMEM capacity (per TensorCore); conservative fallback."""
    try:
        info = pltpu.get_tpu_info()
        cap = getattr(info, "vmem_capacity_bytes", None)
        if cap:
            return int(cap)
    except Exception:
        pass
    return 64 * 1024 * 1024  # v7x-sized fallback; safe on every generation


def _plan_tiling(c1, ce, hw, itemsize=4):
    """Pick (lane_tile, padded_hw, vmem_limit) such that the double-buffered
    (c1, tile) input block and (ce, tile) output block fit comfortably in VMEM
    on the current chip generation."""
    budget = (_tpu_vmem_bytes() * 3) // 4            # headroom for scratch/params
    per_lane = 2 * itemsize * (c1 + ce)              # double-buffered in + out
    cap_lanes = budget // max(per_lane, 1)
    cap_lanes = min(max(cap_lanes, 128), 8192)       # diminishing returns >8K lanes
    cap_lanes -= cap_lanes % 128

    hw128 = ((hw + 127) // 128) * 128
    if hw128 <= cap_lanes:
        return hw128, hw128, budget                  # one lane-dense tile per batch

    # Search a few padded extents for the largest multiple-of-128 tile that
    # divides the padded HW and respects the VMEM cap.
    best_tile, best_hw = 128, hw128
    for extra in range(9):
        hw_p = hw128 + extra * 128
        n = hw_p // 128
        d_best, d = 1, 1
        while d * d <= n:
            if n % d == 0:
                for cand in (d, n // d):
                    if cand * 128 <= cap_lanes and cand > d_best:
                        d_best = cand
            d += 1
        if d_best * 128 > best_tile:
            best_tile, best_hw = d_best * 128, hw_p
    return best_tile, best_hw, budget


# ----------------------------------------------------------------------------
# Fused kernel: 1x1 conv (BN-eval folded) + channel selection + Hadamard
# expansion + CrossHadaNorm affine + concatenated output, all in one pass.
#   y  = W_fold @ x + shift                      (C,  thw)
#   xi = A_i @ y   (= s * y[idx_i])              (CE, thw)
#   xj = A_j @ y   (=      y[idx_j])             (CE, thw)
#   out rows [0,C)   <- y
#   out rows [C,C+CE)<- xi * xj + t
# ----------------------------------------------------------------------------
def _make_fused_kernel(c1, ce_x):
    def kernel(x_ref, w_ref, shift_ref, ai_ref, aj_ref, t_ref, o_ref):
        # 1x1 conv + folded BatchNorm (eval) on the MXU; lane axis = HW tile.
        y = jnp.dot(w_ref[...], x_ref[...], preferred_element_type=jnp.float32)
        y = y + shift_ref[...]
        # Slab store #1: passthrough channels (no VMEM concat copy).
        o_ref[pl.ds(0, c1), :] = y.astype(o_ref.dtype)
        # Hadamard expansion via two static (CE, C) selection matmuls
        # (CrossHadaNorm scale already folded into ai); no per-pair slices.
        xi = jnp.dot(ai_ref[...], y, preferred_element_type=jnp.float32)
        xj = jnp.dot(aj_ref[...], y, preferred_element_type=jnp.float32)
        # Slab store #2: expanded channels.
        o_ref[pl.ds(c1, ce_x), :] = (xi * xj + t_ref[...]).astype(o_ref.dtype)
    return kernel


def hadamard_fused(x_flat, w_fold, shift, a_i, a_j, t):
    """x_flat: (B, C, HW) f32; returns (B, C + CE, HW) f32 (concatenated)."""
    B, C, HW = x_flat.shape
    ce_x = a_i.shape[1]
    ce = C + ce_x

    thw, hw_pad, vmem_limit = _plan_tiling(C, ce, HW)
    if hw_pad != HW:
        x_in = jnp.pad(x_flat, ((0, 0), (0, 0), (0, hw_pad - HW)))
    else:
        x_in = x_flat

    grid = (B, hw_pad // thw)
    out = pl.pallas_call(
        _make_fused_kernel(C, ce_x),
        out_shape=jax.ShapeDtypeStruct((B, ce, hw_pad), jnp.float32),
        grid_spec=pltpu.PrefetchScalarGridSpec(
            num_scalar_prefetch=0,
            grid=grid,
            in_specs=[
                pl.BlockSpec((None, C, thw), lambda b, h: (b, 0, h)),
                pl.BlockSpec((C, C), lambda b, h: (0, 0)),
                pl.BlockSpec((C, 1), lambda b, h: (0, 0)),
                pl.BlockSpec((None, ce_x, C), lambda b, h: (b, 0, 0)),
                pl.BlockSpec((None, ce_x, C), lambda b, h: (b, 0, 0)),
                pl.BlockSpec((ce_x, 1), lambda b, h: (0, 0)),
            ],
            out_specs=pl.BlockSpec((None, ce, thw), lambda b, h: (b, 0, h)),
        ),
        compiler_params=pltpu.CompilerParams(
            dimension_semantics=("parallel", "parallel"),
            vmem_limit_bytes=int(vmem_limit)),
    )(x_in, w_fold, shift, a_i, a_j, t)

    if hw_pad != HW:
        out = out[:, :, :HW]
    return out


# ----------------------------------------------------------------------------
# Module wrapper (eval-mode forward)
# ----------------------------------------------------------------------------
class HadamardExpansionV2:
    def __init__(self, c1, cs, key):
        self.c1 = c1
        self.cs = cs
        self.cs_expand = cs * (cs - 1) // 2
        self.ce = c1 + self.cs_expand
        self.eps = 1e-5

        ks = jax.random.split(key, 8)
        # nn.Conv2d(c1, c1, 1): weight (c1, c1, 1, 1) -> (c1, c1), bias (c1,)
        self.fc_w = jax.random.normal(ks[0], (c1, c1), jnp.float32) * 0.2
        self.fc_b = jax.random.normal(ks[1], (c1,), jnp.float32) * 0.1
        # nn.BatchNorm2d(c1) (eval: running stats + affine)
        self.bn_gamma = 1.0 + 0.1 * jax.random.normal(ks[2], (c1,), jnp.float32)
        self.bn_beta = 0.1 * jax.random.normal(ks[3], (c1,), jnp.float32)
        self.bn_mean = 0.05 * jax.random.normal(ks[4], (c1,), jnp.float32)
        self.bn_var = jnp.abs(1.0 + 0.1 * jax.random.normal(ks[5], (c1,), jnp.float32))
        # nn.Linear(c1, c1)
        self.eva_w = jax.random.normal(ks[6], (c1, c1), jnp.float32) * 0.2
        self.eva_b = jax.random.normal(ks[7], (c1,), jnp.float32) * 0.1
        # CrossHadaNorm(cs_expand) learnable affine
        self.chn_w = jnp.ones((self.cs_expand,), jnp.float32)
        self.chn_b = jnp.zeros((self.cs_expand,), jnp.float32)

        # Hadamard pair indices are statically known.
        pairs = tuple((i, j) for i in range(cs) for j in range(i + 1, cs))
        self.hadamard_i = jnp.asarray([p[0] for p in pairs], jnp.int32)
        self.hadamard_j = jnp.asarray([p[1] for p in pairs], jnp.int32)

    # ---- parameter folding -------------------------------------------------
    def _folded_conv_bn(self):
        inv_std = 1.0 / jnp.sqrt(self.bn_var + self.eps)
        scale = self.bn_gamma * inv_std                                  # (C,)
        w_fold = scale[:, None] * self.fc_w                              # (C, C)
        shift = scale * (self.fc_b - self.bn_mean) + self.bn_beta        # (C,)
        return w_fold, shift[:, None]

    def _cross_hada_norm_affine(self):
        # TODO(synk): CrossHadaNorm source not provided; approximated as a
        # normalization of the channel product using norm_x's (gamma, beta)
        # at the hadamard_i/hadamard_j indices (expected mean b_i*b_j,
        # expected var g_i^2 g_j^2 + g_i^2 b_j^2 + g_j^2 b_i^2), followed by
        # CrossHadaNorm's own per-expanded-channel learnable affine.
        g_i = self.bn_gamma[self.hadamard_i]
        g_j = self.bn_gamma[self.hadamard_j]
        b_i = self.bn_beta[self.hadamard_i]
        b_j = self.bn_beta[self.hadamard_j]
        prod_mean = b_i * b_j
        prod_var = g_i ** 2 * g_j ** 2 + g_i ** 2 * b_j ** 2 + g_j ** 2 * b_i ** 2
        s = self.chn_w / jnp.sqrt(prod_var + self.eps)                   # (CE,)
        t = self.chn_b - prod_mean * s                                   # (CE,)
        return s[:, None], t[:, None]

    # ---- forward -----------------------------------------------------------
    def __call__(self, x_nchw):
        B, C, H, W = x_nchw.shape
        assert C == self.c1
        HW = H * W

        x_flat = x_nchw.reshape(B, C, HW)               # NCHW-native, no transpose
        w_fold, shift = self._folded_conv_bn()           # (C,C), (C,1)

        # ---- _get_selected (eval branch), in XLA on tiny tensors ----
        # avg-pool of y computed via linearity: mean_hw(y) = W_fold@mean_hw(x)+shift
        x_mean = jnp.mean(x_flat, axis=-1)                               # (B, C)
        avg_y = x_mean @ w_fold.T + shift[:, 0][None, :]                 # (B, C)
        logits = avg_y @ self.eva_w.T + self.eva_b                       # (B, C)
        _, topk_idx = lax.top_k(logits, self.cs)                         # (B, cs)
        sel_mat = jax.nn.one_hot(topk_idx, C, dtype=jnp.float32)         # (B, cs, C)

        # ---- static Hadamard expansion matrices (CrossHadaNorm scale folded) ----
        s, t = self._cross_hada_norm_affine()                            # (CE,1) x2
        a_i = s[None] * sel_mat[:, self.hadamard_i, :]                   # (B, CE, C)
        a_j = sel_mat[:, self.hadamard_j, :]                             # (B, CE, C)

        # ---- single fused kernel: conv+BN, select, hadamard, affine, concat ----
        out = hadamard_fused(x_flat, w_fold, shift, a_i, a_j, t)         # (B, ce, HW)
        return out.reshape(B, self.ce, H, W)

    # ---- pure-JAX reference for validation ----------------------------------
    def reference(self, x_nchw):
        B, C, H, W = x_nchw.shape
        HW = H * W
        x_flat = x_nchw.reshape(B, C, HW)
        w_fold, shift = self._folded_conv_bn()
        y = jnp.einsum('oc,bcp->bop', w_fold, x_flat) + shift[None]      # (B,C,HW)
        avg = jnp.mean(y, axis=-1)
        logits = avg @ self.eva_w.T + self.eva_b
        _, topk_idx = lax.top_k(logits, self.cs)
        x_sel = jnp.take_along_axis(y, topk_idx[:, :, None], axis=1)     # (B,cs,HW)
        x_i = x_sel[:, self.hadamard_i, :]
        x_j = x_sel[:, self.hadamard_j, :]
        s, t = self._cross_hada_norm_affine()
        ex = x_i * x_j * s[None] + t[None]
        out = jnp.concatenate([y, ex], axis=1)
        return out.reshape(B, self.ce, H, W)


if __name__ == "__main__":
    key = jax.random.PRNGKey(0)
    k_param, k_x = jax.random.split(key)

    B, C1, CS, H, W = 2, 8, 4, 16, 16
    module = HadamardExpansionV2(C1, CS, k_param)

    x = jax.random.normal(k_x, (B, C1, H, W), jnp.float32)
    out = jax.jit(module.__call__)(x)
    out = jax.block_until_ready(out)

    assert out.shape == (B, module.ce, H, W), out.shape
    assert out.dtype == jnp.float32
    assert bool(jnp.all(jnp.isfinite(out)))

    ref = module.reference(x)
    max_err = float(jnp.max(jnp.abs(out - ref)))
    assert bool(jnp.allclose(out, ref, rtol=1e-2, atol=1e-2)), max_err

    print("KERNEL_OK")
</pallas_src>

<mosaic_0001>
module attributes {stable_mosaic.version = 11 : i64} {
  func.func @kernel(%arg0: i32, %arg1: i32, %arg2: memref<1x8x256xf32, #tpu.memory_space<vmem>>, %arg3: memref<8x8xf32, #tpu.memory_space<vmem>>, %arg4: memref<8x1xf32, #tpu.memory_space<vmem>>, %arg5: memref<1x6x8xf32, #tpu.memory_space<vmem>>, %arg6: memref<1x6x8xf32, #tpu.memory_space<vmem>>, %arg7: memref<6x1xf32, #tpu.memory_space<vmem>>, %arg8: memref<1x14x256xf32, #tpu.memory_space<vmem>>) attributes {dimension_semantics = [#tpu.dimension_semantics<parallel>, #tpu.dimension_semantics<parallel>], iteration_bounds = array<i64: 2, 1>, scalar_prefetch = 0 : i64, scratch_operands = 0 : i64, tpu.core_type = #tpu.core_type<tc>, window_params = [{transform_indices = @transform_0, window_bounds = array<i64: 1, 8, 256>}, {pipeline_mode = #tpu.pipeline_mode<synchronous>, transform_indices = @transform_1, window_bounds = array<i64: 8, 8>}, {pipeline_mode = #tpu.pipeline_mode<synchronous>, transform_indices = @transform_2, window_bounds = array<i64: 8, 1>}, {transform_indices = @transform_3, window_bounds = array<i64: 1, 6, 8>}, {transform_indices = @transform_4, window_bounds = array<i64: 1, 6, 8>}, {pipeline_mode = #tpu.pipeline_mode<synchronous>, transform_indices = @transform_5, window_bounds = array<i64: 6, 1>}, {transform_indices = @transform_6, window_bounds = array<i64: 1, 14, 256>}]} {
    %c0 = arith.constant 0 : index
    %c0_0 = arith.constant 0 : index
    %0 = vector.load %arg3[%c0, %c0_0] : memref<8x8xf32, #tpu.memory_space<vmem>>, vector<8x8xf32>
    %c0_1 = arith.constant 0 : index
    %c0_2 = arith.constant 0 : index
    %c0_3 = arith.constant 0 : index
    %1 = vector.load %arg2[%c0_1, %c0_2, %c0_3] : memref<1x8x256xf32, #tpu.memory_space<vmem>>, vector<1x8x256xf32>
    %2 = vector.shape_cast %1 : vector<1x8x256xf32> to vector<8x256xf32>
    %cst = arith.constant dense<0.000000e+00> : vector<8x256xf32>
    %3 = tpu.matmul %0, %2, %cst {dimension_numbers = #tpu.dot_dimension_numbers<[1], [0], [0], [1], [0, 0, 1, 1], [], []>} : vector<8x8xf32>, vector<8x256xf32>, vector<8x256xf32> -> vector<8x256xf32>
    %c0_4 = arith.constant 0 : index
    %c0_5 = arith.constant 0 : index
    %4 = vector.load %arg4[%c0_4, %c0_5] : memref<8x1xf32, #tpu.memory_space<vmem>>, vector<8x1xf32>
    %5 = vector.broadcast %4 : vector<8x1xf32> to vector<8x256xf32>
    %6 = arith.addf %3, %5 : vector<8x256xf32>
    %c0_6 = arith.constant 0 : index
    %c0_7 = arith.constant 0 : index
    %c0_8 = arith.constant 0 : index
    %7 = vector.load %arg8[%c0_6, %c0_7, %c0_8] : memref<1x14x256xf32, #tpu.memory_space<vmem>>, vector<1x8x256xf32>
    %8 = vector.shape_cast %7 : vector<1x8x256xf32> to vector<8x256xf32>
    %9 = vector.shape_cast %6 : vector<8x256xf32> to vector<1x8x256xf32>
    tpu.vector_store %arg8[%c0_6, %c0_7, %c0_8], %9 {strides = array<i32>} : memref<1x14x256xf32, #tpu.memory_space<vmem>>, vector<1x8x256xf32>,
    %c0_9 = arith.constant 0 : index
    %c0_10 = arith.constant 0 : index
    %c0_11 = arith.constant 0 : index
    %10 = vector.load %arg5[%c0_9, %c0_10, %c0_11] : memref<1x6x8xf32, #tpu.memory_space<vmem>>, vector<1x6x8xf32>
    %11 = vector.shape_cast %10 : vector<1x6x8xf32> to vector<6x8xf32>
    %cst_12 = arith.constant dense<0.000000e+00> : vector<6x256xf32>
    %12 = tpu.matmul %11, %6, %cst_12 {dimension_numbers = #tpu.dot_dimension_numbers<[1], [0], [0], [1], [0, 0, 1, 1], [], []>} : vector<6x8xf32>, vector<8x256xf32>, vector<6x256xf32> -> vector<6x256xf32>
    %c0_13 = arith.constant 0 : index
    %c0_14 = arith.constant 0 : index
    %c0_15 = arith.constant 0 : index
    %13 = vector.load %arg6[%c0_13, %c0_14, %c0_15] : memref<1x6x8xf32, #tpu.memory_space<vmem>>, vector<1x6x8xf32>
    %14 = vector.shape_cast %13 : vector<1x6x8xf32> to vector<6x8xf32>
    %cst_16 = arith.constant dense<0.000000e+00> : vector<6x256xf32>
    %15 = tpu.matmul %14, %6, %cst_16 {dimension_numbers = #tpu.dot_dimension_numbers<[1], [0], [0], [1], [0, 0, 1, 1], [], []>} : vector<6x8xf32>, vector<8x256xf32>, vector<6x256xf32> -> vector<6x256xf32>
    %16 = arith.mulf %12, %15 : vector<6x256xf32>
    %c0_17 = arith.constant 0 : index
    %c0_18 = arith.constant 0 : index
    %17 = vector.load %arg7[%c0_17, %c0_18] : memref<6x1xf32, #tpu.memory_space<vmem>>, vector<6x1xf32>
    %18 = vector.broadcast %17 : vector<6x1xf32> to vector<6x256xf32>
    %19 = arith.addf %16, %18 : vector<6x256xf32>
    %c0_19 = arith.constant 0 : index
    %c8 = arith.constant 8 : index
    %c0_20 = arith.constant 0 : index
    %20 = vector.load %arg8[%c0_19, %c8, %c0_20] : memref<1x14x256xf32, #tpu.memory_space<vmem>>, vector<1x6x256xf32>
    %21 = vector.shape_cast %20 : vector<1x6x256xf32> to vector<6x256xf32>
    %22 = vector.shape_cast %19 : vector<6x256xf32> to vector<1x6x256xf32>
    tpu.vector_store %arg8[%c0_19, %c8, %c0_20], %22 {strides = array<i32>} : memref<1x14x256xf32, #tpu.memory_space<vmem>>, vector<1x6x256xf32>,
    return
  }
  func.func @transform_0(%arg0: i32, %arg1: i32) -> (i32, i32, i32) {
    %c0_i32 = arith.constant 0 : i32
    %c0_i32_0 = arith.constant 0 : i32
    return %arg0, %c0_i32, %arg1 : i32, i32, i32
  }
  func.func @transform_1(%arg0: i32, %arg1: i32) -> (i32, i32) {
    %c0_i32 = arith.constant 0 : i32
    %c0_i32_0 = arith.constant 0 : i32
    %c0_i32_1 = arith.constant 0 : i32
    return %c0_i32, %c0_i32_0 : i32, i32
  }
  func.func @transform_2(%arg0: i32, %arg1: i32) -> (i32, i32) {
    %c0_i32 = arith.constant 0 : i32
    %c0_i32_0 = arith.constant 0 : i32
    %c0_i32_1 = arith.constant 0 : i32
    return %c0_i32, %c0_i32_0 : i32, i32
  }
  func.func @transform_3(%arg0: i32, %arg1: i32) -> (i32, i32, i32) {
    %c0_i32 = arith.constant 0 : i32
    %c0_i32_0 = arith.constant 0 : i32
    %c0_i32_1 = arith.constant 0 : i32
    return %arg0, %c0_i32, %c0_i32_0 : i32, i32, i32
  }
  func.func @transform_4(%arg0: i32, %arg1: i32) -> (i32, i32, i32) {
    %c0_i32 = arith.constant 0 : i32
    %c0_i32_0 = arith.constant 0 : i32
    %c0_i32_1 = arith.constant 0 : i32
    return %arg0, %c0_i32, %c0_i32_0 : i32, i32, i32
  }
  func.func @transform_5(%arg0: i32, %arg1: i32) -> (i32, i32) {
    %c0_i32 = arith.constant 0 : i32
    %c0_i32_0 = arith.constant 0 : i32
    %c0_i32_1 = arith.constant 0 : i32
    return %c0_i32, %c0_i32_0 : i32, i32
  }
  func.func @transform_6(%arg0: i32, %arg1: i32) -> (i32, i32, i32) {
    %c0_i32 = arith.constant 0 : i32
    %c0_i32_0 = arith.constant 0 : i32
    return %arg0, %c0_i32, %arg1 : i32, i32, i32
  }
}

</mosaic_0001>

<llo_original>
// kernel: a_call__.1
$region0: #{a_call__.1}
  #allocation0 [shape = 'u32[]', space=smem, size = 0x4, offset = 0x4, fixed_abs, tag = 'smem constant byte address 0x4 - core index']
  #allocation1 [shape = 'u32[144,128]{1,0:T(1,128)}', space=vmem, size = 0x12000, scoped, tag = 'internal scratch']
  %s0 = inlined_call_operand.vmem [shape: f32[2,8,256], index: 0, kind: input, shape index: {}]
  %s1 = inlined_call_operand.vmem [shape: f32[8,8], index: 1, kind: input, shape index: {}]
  %s2 = inlined_call_operand.vmem [shape: f32[8,1], index: 2, kind: input, shape index: {}]
  %s3 = inlined_call_operand.vmem [shape: f32[2,6,8], index: 3, kind: input, shape index: {}]
  %s4 = inlined_call_operand.vmem [shape: f32[2,6,8], index: 4, kind: input, shape index: {}]
  %s5 = inlined_call_operand.vmem [shape: f32[6,1], index: 5, kind: input, shape index: {}]
  %s6 = inlined_call_operand.vmem [shape: f32[2,14,256], index: 6, kind: output, shape index: {}]
  %s7 = sld [smem:[#allocation0]]
  $region57: #{a_call__.1} parent=0
    _
  %s9 = ssub.s32 1, %s7
  %s10 = scalar_select 0, %s9, %s7
  loop: start=0, step=1, limit=4
  $region2: #{a_call__.1} parent=0 // loop_pre_header
    _
  $region3: #{a_call__.1} parent=0 // loop_header
    %s12 = sphi 0, %s16
    %p13 = scmp.ge.s32.totalorder %s12, 4
    %s19 = sphi 0, %s31
    %s20 = sphi 0, %s27
    %s21 = sphi 0, %s19
    %s22 = sphi 0, %s20
    %s23 = sphi 0, %s21
    %s24 = sphi 0, %s22
    %s36 = sphi 0, %s38
    %s39 = sphi 0, %s36
    %s40 = sphi 0, %s39
    %s56 = sphi 0, %s40
    %s60 = sphi 0, %s60
    %s62 = sphi 0, %s60
    %s63 = sphi 0, %s62
    %s77 = sphi 0, %s63
    %s81 = sphi 0, %s81
    %s83 = sphi 0, %s81
    %s84 = sphi 0, %s83
    %s98 = sphi 0, %s84
    %s104 = sphi 0, %s106
    %s107 = sphi 0, %s104
    %s108 = sphi 0, %s107
    %s124 = sphi 0, %s108
    %s130 = sphi 0, %s132
    %s133 = sphi 0, %s130
    %s134 = sphi 0, %s133
    %s150 = sphi 0, %s134
    %s154 = sphi 0, %s154
    %s156 = sphi 0, %s154
    %s157 = sphi 0, %s156
    %s171 = sphi 0, %s157
    %s179 = sphi 0, %s181
    %s182 = sphi 0, %s179
    %s183 = sphi 0, %s182
    %s199 = sphi 0, %s183
  $region4: #{a_call__.1} parent=0 // loop_header_branch
    %15 = sbr.rel (%p13) target = $region8
  $region5: #{a_call__.1} parent=0 // loop_body
    %s17 = ssub.s32 %s12, 1
    %s18 = ssub.s32 %s12, 2
    %s25 = sadd.s32 1, %s20
    %p26 = scmp.ge.s32.totalorder %s25, 1
    %s27 = scalar_select %p26, 0, %s25
    %s28 = sadd.s32 1, %s19
    %s29 = scalar_select %p26, %s28, %s19
    %p30 = scmp.ge.s32.totalorder %s29, 2
    %s31 = scalar_select %p30, 0, %s29
    %s32 = ssub.s32 %s19, %s31
    %s33 = ssub.s32 %s20, %s27
    %s34 = sor.u32 %s32, %s33
    %p35 = scmp.eq.s32.totalorder %s34, 0
    %s37 = sadd.s32 %s36, 1
    %s38 = scalar_select %p35, %s36, %s37
    %p41 = pneg %p35
    %p42 = scmp.eq.s32.totalorder %s12, 1
    %p43 = por %p41, %p42
    %p44 = scmp.ne.s32.totalorder %s36, %s39
    %p45 = scmp.eq.s32.totalorder %s12, 0
    %p46 = por %p44, %p45
    %p47 = scmp.ne.s32.totalorder %s36, %s39
    %p48 = scmp.eq.s32.totalorder %s17, 1
    %p49 = por %p47, %p48
    %p50 = scmp.ne.s32.totalorder %s39, %s40
    %p51 = scmp.eq.s32.totalorder %s17, 0
    %p52 = por %p50, %p51
    %p53 = scmp.ne.s32.totalorder %s39, %s40
    %p54 = scmp.eq.s32.totalorder %s18, 1
    %p55 = por %p53, %p54
    %p57 = scmp.ne.s32.totalorder %s40, %s56
    %p58 = scmp.eq.s32.totalorder %s18, 0
    %p59 = por %p57, %p58
    %s61 = sadd.s32 %s60, 1
    %p64 = scmp.eq.s32.totalorder %s12, 1
    %p65 = scmp.ne.s32.totalorder %s60, %s62
    %p66 = scmp.eq.s32.totalorder %s12, 0
    %p67 = por %p65, %p66
    %p68 = scmp.ne.s32.totalorder %s60, %s62
    %p69 = scmp.eq.s32.totalorder %s17, 1
    %p70 = por %p68, %p69
    %p71 = scmp.ne.s32.totalorder %s62, %s63
    %p72 = scmp.eq.s32.totalorder %s17, 0
    %p73 = por %p71, %p72
    %p74 = scmp.ne.s32.totalorder %s62, %s63
    %p75 = scmp.eq.s32.totalorder %s18, 1
    %p76 = por %p74, %p75
    %p78 = scmp.ne.s32.totalorder %s63, %s77
    %p79 = scmp.eq.s32.totalorder %s18, 0
    %p80 = por %p78, %p79
    %s82 = sadd.s32 %s81, 1
    %p85 = scmp.eq.s32.totalorder %s12, 1
    %p86 = scmp.ne.s32.totalorder %s81, %s83
    %p87 = scmp.eq.s32.totalorder %s12, 0
    %p88 = por %p86, %p87
    %p89 = scmp.ne.s32.totalorder %s81, %s83
    %p90 = scmp.eq.s32.totalorder %s17, 1
    %p91 = por %p89, %p90
    %p92 = scmp.ne.s32.totalorder %s83, %s84
    %p93 = scmp.eq.s32.totalorder %s17, 0
    %p94 = por %p92, %p93
    %p95 = scmp.ne.s32.totalorder %s83, %s84
    %p96 = scmp.eq.s32.totalorder %s18, 1
    %p97 = por %p95, %p96
    %p99 = scmp.ne.s32.totalorder %s84, %s98
    %p100 = scmp.eq.s32.totalorder %s18, 0
    %p101 = por %p99, %p100
    %s102 = ssub.s32 %s19, %s31
    %p103 = scmp.eq.s32.totalorder %s102, 0
    %s105 = sadd.s32 %s104, 1
    %s106 = scalar_select %p103, %s104, %s105
    %p109 = pneg %p103
    %p110 = scmp.eq.s32.totalorder %s12, 1
    %p111 = por %p109, %p110
    %p112 = scmp.ne.s32.totalorder %s104, %s107
    %p113 = scmp.eq.s32.totalorder %s12, 0
    %p114 = por %p112, %p113
    %p115 = scmp.ne.s32.totalorder %s104, %s107
    %p116 = scmp.eq.s32.totalorder %s17, 1
    %p117 = por %p115, %p116
    %p118 = scmp.ne.s32.totalorder %s107, %s108
    %p119 = scmp.eq.s32.totalorder %s17, 0
    %p120 = por %p118, %p119
    %p121 = scmp.ne.s32.totalorder %s107, %s108
    %p122 = scmp.eq.s32.totalorder %s18, 1
    %p123 = por %p121, %p122
    %p125 = scmp.ne.s32.totalorder %s108, %s124
    %p126 = scmp.eq.s32.totalorder %s18, 0
    %p127 = por %p125, %p126
    %s128 = ssub.s32 %s19, %s31
    %p129 = scmp.eq.s32.totalorder %s128, 0
    %s131 = sadd.s32 %s130, 1
    %s132 = scalar_select %p129, %s130, %s131
    %p135 = pneg %p129
    %p136 = scmp.eq.s32.totalorder %s12, 1
    %p137 = por %p135, %p136
    %p138 = scmp.ne.s32.totalorder %s130, %s133
    %p139 = scmp.eq.s32.totalorder %s12, 0
    %p140 = por %p138, %p139
    %p141 = scmp.ne.s32.totalorder %s130, %s133
    %p142 = scmp.eq.s32.totalorder %s17, 1
    %p143 = por %p141, %p142
    %p144 = scmp.ne.s32.totalorder %s133, %s134
    %p145 = scmp.eq.s32.totalorder %s17, 0
    %p146 = por %p144, %p145
    %p147 = scmp.ne.s32.totalorder %s133, %s134
    %p148 = scmp.eq.s32.totalorder %s18, 1
    %p149 = por %p147, %p148
    %p151 = scmp.ne.s32.totalorder %s134, %s150
    %p152 = scmp.eq.s32.totalorder %s18, 0
    %p153 = por %p151, %p152
    %s155 = sadd.s32 %s154, 1
    %p158 = scmp.eq.s32.totalorder %s12, 1
    %p159 = scmp.ne.s32.totalorder %s154, %s156
    %p160 = scmp.eq.s32.totalorder %s12, 0
    %p161 = por %p159, %p160
    %p162 = scmp.ne.s32.totalorder %s154, %s156
    %p163 = scmp.eq.s32.totalorder %s17, 1
    %p164 = por %p162, %p163
    %p165 = scmp.ne.s32.totalorder %s156, %s157
    %p166 = scmp.eq.s32.totalorder %s17, 0
    %p167 = por %p165, %p166
    %p168 = scmp.ne.s32.totalorder %s156, %s157
    %p169 = scmp.eq.s32.totalorder %s18, 1
    %p170 = por %p168, %p169
    %p172 = scmp.ne.s32.totalorder %s157, %s171
    %p173 = scmp.eq.s32.totalorder %s18, 0
    %p174 = por %p172, %p173
    %s175 = ssub.s32 %s19, %s31
    %s176 = ssub.s32 %s20, %s27
    %s177 = sor.u32 %s175, %s176
    %p178 = scmp.eq.s32.totalorder %s177, 0
    %s180 = sadd.s32 %s179, 1
    %s181 = scalar_select %p178, %s179, %s180
    %p184 = pneg %p178
    %p185 = scmp.eq.s32.totalorder %s12, 1
    %p186 = por %p184, %p185
    %p187 = scmp.ne.s32.totalorder %s179, %s182
    %p188 = scmp.eq.s32.totalorder %s12, 0
    %p189 = por %p187, %p188
    %p190 = scmp.ne.s32.totalorder %s179, %s182
    %p191 = scmp.eq.s32.totalorder %s17, 1
    %p192 = por %p190, %p191
    %p193 = scmp.ne.s32.totalorder %s182, %s183
    %p194 = scmp.eq.s32.totalorder %s17, 0
    %p195 = por %p193, %p194
    %p196 = scmp.ne.s32.totalorder %s182, %s183
    %p197 = scmp.eq.s32.totalorder %s18, 1
    %p198 = por %p196, %p197
    %p200 = scmp.ne.s32.totalorder %s183, %s199
    %p201 = scmp.eq.s32.totalorder %s18, 0
    %p202 = por %p200, %p201
    %p203 = scmp.le.s32.totalorder 1, %s12
    %p204 = scmp.lt.s32.totalorder %s12, 3
    %p205 = pnand %p203, %p204
    %p206 = pneg %p205
    // Predicated region
    $region9: #{a_call__.1} parent=5 // pred_check
      _
    $region10: #{a_call__.1} parent=5 // pred_check_branch
      %208 = sbr.rel (%p205) target = $region12
    $region11: #{a_call__.1} parent=5 // pred_region
      %s209 = ssub.s32 %s12, 1
      // Predicated region
      $region13: #{a_call__.1} parent=11 // pred_check
        %p210 = pneg %p73
      $region14: #{a_call__.1} parent=11 // pred_check_branch
        %212 = sbr.rel (%p210) target = $region16
      $region15: #{a_call__.1} parent=11 // pred_region
        _
      $region16: #{a_call__.1} parent=11 // pred_fallthru
        _
      // Predicated region
      $region17: #{a_call__.1} parent=11 // pred_check
        %p213 = pneg %p94
      $region18: #{a_call__.1} parent=11 // pred_check_branch
        %215 = sbr.rel (%p213) target = $region20
      $region19: #{a_call__.1} parent=11 // pred_region
        _
      $region20: #{a_call__.1} parent=11 // pred_fallthru
        _
      // Predicated region
      $region21: #{a_call__.1} parent=11 // pred_check
        %p216 = pneg %p167
      $region22: #{a_call__.1} parent=11 // pred_check_branch
        %218 = sbr.rel (%p216) target = $region24
      $region23: #{a_call__.1} parent=11 // pred_region
        _
      $region24: #{a_call__.1} parent=11 // pred_fallthru
        _
    $region12: #{a_call__.1} parent=5 // pred_fallthru
      _
    %p219 = scmp.lt.s32.totalorder %s12, 2
    // Predicated region
    $region25: #{a_call__.1} parent=5 // pred_check
      %p220 = pneg %p219
    $region26: #{a_call__.1} parent=5 // pred_check_branch
      %222 = sbr.rel (%p220) target = $region28
    $region27: #{a_call__.1} parent=5 // pred_region
      // Predicated region
      $region29: #{a_call__.1} parent=27 // pred_check
        %p223 = pneg %p46
      $region30: #{a_call__.1} parent=27 // pred_check_branch
        %225 = sbr.rel (%p223) target = $region32
      $region31: #{a_call__.1} parent=27 // pred_region
        %s226 = smul.u32 2, %s20
        %p227 = scmp.lt.s32.totalorder %s19, 1
        %s228 = scalar_select %p227, %s19, 1
        %p229 = scmp.lt.s32.totalorder %s226, 1
        %s230 = scalar_select %p229, %s226, 1
        %s231 = smul.addr %s228, 2
        %s232 = sadd.s32 %s230, %s231
        %s233 = smul.addr %s232, 8
        %s234 = scalar_lea.vmem %s0, %s233
        %s235 = smul.u32 2, %s20
      $region32: #{a_call__.1} parent=27 // pred_fallthru
        _
      // Predicated region
      $region33: #{a_call__.1} parent=27 // pred_check
        %p236 = pneg %p114
      $region34: #{a_call__.1} parent=27 // pred_check_branch
        %238 = sbr.rel (%p236) target = $region36
      $region35: #{a_call__.1} parent=27 // pred_region
        %p239 = scmp.lt.s32.totalorder %s19, 1
        %s240 = scalar_select %p239, %s19, 1
        %s241 = smul.addr %s240, 8
        %s242 = scalar_lea.vmem %s3, %s241
      $region36: #{a_call__.1} parent=27 // pred_fallthru
        _
      // Predicated region
      $region37: #{a_call__.1} parent=27 // pred_check
        %p243 = pneg %p140
      $region38: #{a_call__.1} parent=27 // pred_check_branch
        %245 = sbr.rel (%p243) target = $region40
      $region39: #{a_call__.1} parent=27 // pred_region
        %p246 = scmp.lt.s32.totalorder %s19, 1
        %s247 = scalar_select %p246, %s19, 1
        %s248 = smul.addr %s247, 8
        %s249 = scalar_lea.vmem %s4, %s248
      $region40: #{a_call__.1} parent=27 // pred_fallthru
        _
    $region28: #{a_call__.1} parent=5 // pred_fallthru
      _
    %p250 = scmp.le.s32.totalorder 1, %s12
    %p251 = scmp.lt.s32.totalorder %s12, 3
    %p252 = pnand %p250, %p251
    %p253 = pneg %p252
    // Predicated region
    $region41: #{a_call__.1} parent=5 // pred_check
      _
    $region42: #{a_call__.1} parent=5 // pred_check_branch
      %255 = sbr.rel (%p252) target = $region44
    $region43: #{a_call__.1} parent=5 // pred_region
      %s256 = ssub.s32 %s12, 1
      %s257 = smul.u32 2, %s22
      %p258 = scmp.lt.s32.totalorder %s21, 1
      %s259 = scalar_select %p258, %s21, 1
      %p260 = scmp.lt.s32.totalorder %s257, 1
      %s261 = scalar_select %p260, %s257, 1
      %s262 = smul.addr %s259, 2
      %s263 = sadd.s32 %s261, %s262
      %s264 = smul.addr %s263, 8
      %s265 = scalar_lea.vmem %s0, %s264
      %p266 = pneg %p52
      %p267 = pneg %p49
      %p268 = pneg %p73
      %p269 = pneg %p70
      %p270 = pneg %p94
      %p271 = pneg %p91
      %p272 = scmp.lt.s32.totalorder %s21, 1
      %s273 = scalar_select %p272, %s21, 1
      %s274 = smul.addr %s273, 8
      %s275 = scalar_lea.vmem %s3, %s274
      %p276 = pneg %p120
      %p277 = pneg %p117
      %p278 = scmp.lt.s32.totalorder %s21, 1
      %s279 = scalar_select %p278, %s21, 1
      %s280 = smul.addr %s279, 8
      %s281 = scalar_lea.vmem %s4, %s280
      %p282 = pneg %p146
      %p283 = pneg %p143
      %p284 = pneg %p167
      %p285 = pneg %p164
      %p286 = pneg %p195
      %p287 = pneg %p192
      %s288 = smul.u32 2, %s22
      %p289 = scmp.lt.s32.totalorder %s21, 1
      %s290 = scalar_select %p289, %s21, 1
      %p291 = scmp.lt.s32.totalorder %s288, 1
      %s292 = scalar_select %p291, %s288, 1
      %s293 = smul.addr %s290, 4
      %s294 = sadd.s32 %s292, %s293
      %s295 = smul.addr %s294, 8
      %s296 = scalar_lea.vmem %s6, %s295
      %s297 = smul.u32 2, %s22
      %p298 = scmp.lt.s32.totalorder %s21, 1
      %s299 = scalar_select %p298, %s21, 1
      %p300 = scmp.lt.s32.totalorder %s297, 1
      %s301 = scalar_select %p300, %s297, 1
      %s302 = smul.addr %s299, 2
      %s303 = sadd.s32 %s301, %s302
      %s304 = smul.addr %s303, 8
      %s305 = scalar_lea.vmem %s0, %s304
      %s306 = smul.u32 2, %s22
      %p307 = scmp.lt.s32.totalorder %s21, 1
      %s308 = scalar_select %p307, %s21, 1
      %s309 = smul.addr %s308, 8
      %s310 = scalar_lea.vmem %s3, %s309
      %p311 = scmp.lt.s32.totalorder %s21, 1
      %s312 = scalar_select %p311, %s21, 1
      %s313 = smul.addr %s312, 8
      %s314 = scalar_lea.vmem %s4, %s313
      %s315 = smul.u32 2, %s22
      %p316 = scmp.lt.s32.totalorder %s21, 1
      %s317 = scalar_select %p316, %s21, 1
      %p318 = scmp.lt.s32.totalorder %s315, 1
      %s319 = scalar_select %p318, %s315, 1
      %s320 = smul.addr %s317, 4
      %s321 = sadd.s32 %s319, %s320
      %s322 = smul.addr %s321, 8
      %s323 = scalar_lea.vmem %s6, %s322
      %s324 = smul.u32 2, %s22
      %v325 = vld [vmem:[%s1] sm:$0xff]
      %v326 = vld [vmem:[%s305] sm:$0xff]
      %v327 = vld [vmem:[%s305 + $0x8] sm:$0xff]
      %v328 = vld [vmem:[%s2] sm:$0xff]
      %330 = vset.pattern.permute.xlu0 0
      %331 = vperm.xlu0 %330, %v328
      %v332 = vpop.permute.xlu0 %331
      %vm334 = vcmask 64512
      %v336 = vsel %vm334, %v325, 0
      %338 = vmatprep.subr.mxu0 %v327
      %339 = vmatpush1.msra.mxu0 %v326
      %340 = vmatprep.subr.mxu0 0.0
      %341 = vmatpush1.msra.mxu0 0.0
      %342 = vmatprep.subr.mxu0 0.0
      %343 = vmatpush1.msra.mxu0 0.0
      %344 = vmatprep.subr.mxu0 0.0
      %345 = vmatpush1.msra.mxu0 0.0
      %346 = vmatprep.subr.mxu0 0.0
      %347 = vmatpush1.msra.mxu0 0.0
      %348 = vmatprep.subr.mxu0 0.0
      %349 = vmatpush1.msra.mxu0 0.0
      %350 = vmatprep.subr.mxu0 0.0
      %351 = vmatpush1.msra.mxu0 0.0
      %352 = vmatprep.subr.mxu0 0.0
      %353 = vmatpush1.msra.mxu0 0.0
      %354 = vmatprep.subr.mxu0 0.0
      %355 = vmatpush1.msra.mxu0 0.0
      %356 = vmatprep.subr.mxu0 0.0
      %357 = vmatpush1.msra.mxu0 0.0
      %358 = vmatprep.subr.mxu0 0.0
      %359 = vmatpush1.msra.mxu0 0.0
      %360 = vmatprep.subr.mxu0 0.0
      %361 = vmatpush1.msra.mxu0 0.0
      %362 = vmatprep.subr.mxu0 0.0
      %363 = vmatpush1.msra.mxu0 0.0
      %364 = vmatprep.subr.mxu0 0.0
      %365 = vmatpush1.msra.mxu0 0.0
      %366 = vmatprep.subr.mxu0 0.0
      %367 = vmatpush1.msra.mxu0 0.0
      %368 = vmatprep.subr.mxu0 0.0
      %369 = vmatpush1.msra.mxu0 0.0
      %370 = vmatprep.subr.mxu0 0.0
      %371 = vmatpush1.msra.mxu0 0.0
      %372 = vmatprep.subr.mxu0 0.0
      %373 = vmatpush1.msra.mxu0 0.0
      %374 = vmatprep.subr.mxu0 0.0
      %375 = vmatpush1.msra.mxu0 0.0
      %376 = vmatprep.subr.mxu0 0.0
      %377 = vmatpush1.msra.mxu0 0.0
      %378 = vmatprep.subr.mxu0 0.0
      %379 = vmatpush1.msra.mxu0 0.0
      %380 = vmatprep.subr.mxu0 0.0
      %381 = vmatpush1.msra.mxu0 0.0
      %382 = vmatprep.subr.mxu0 0.0
      %383 = vmatpush1.msra.mxu0 0.0
      %384 = vmatprep.subr.mxu0 0.0
      %385 = vmatpush1.msra.mxu0 0.0
      %386 = vmatprep.subr.mxu0 0.0
      %387 = vmatpush1.msra.mxu0 0.0
      %388 = vmatprep.subr.mxu0 0.0
      %389 = vmatpush1.msra.mxu0 0.0
      %390 = vmatprep.subr.mxu0 0.0
      %391 = vmatpush1.msra.mxu0 0.0
      %392 = vmatprep.subr.mxu0 0.0
      %393 = vmatpush1.msra.mxu0 0.0
      %394 = vmatprep.subr.mxu0 0.0
      %395 = vmatpush1.msra.mxu0 0.0
      %396 = vmatprep.subr.mxu0 0.0
      %397 = vmatpush1.msra.mxu0 0.0
      %398 = vmatprep.subr.mxu0 0.0
      %399 = vmatpush1.msra.mxu0 0.0
      %400 = vmatprep.subr.mxu0 0.0
      %401 = vmatpush1.msra.mxu0 0.0
      %402 = vmatprep.mubr.f32.mxu0 0.0
      %403 = vmatmul.mubr.f32.gmra.mrb[0].mxu0 %v336
      %v404 = vpop.f32.mrb[0].mxu0
      %v405 = vadd.f32 %v332, %v404
      %v406 = vpop.f32.mrb[0].mxu0
      %v407 = vadd.f32 %v332, %v406
      %408 = vdwg.mxu0
      %409 = vst [vmem:[%s323] sm:$0xff] %v405
      %410 = vst [vmem:[%s323 + $0x8] sm:$0xff] %v407
      %v411 = vld [vmem:[%s310] sm:$0x3f]
      %v413 = vsel %vm334, %v411, 0
      %415 = vmatprep.subr.mxu0 %v407
      %416 = vmatpush1.msra.mxu0 %v405
      %417 = vmatprep.subr.mxu0 0.0
      %418 = vmatpush1.msra.mxu0 0.0
      %419 = vmatprep.subr.mxu0 0.0
      %420 = vmatpush1.msra.mxu0 0.0
      %421 = vmatprep.subr.mxu0 0.0
      %422 = vmatpush1.msra.mxu0 0.0
      %423 = vmatprep.subr.mxu0 0.0
      %424 = vmatpush1.msra.mxu0 0.0
      %425 = vmatprep.subr.mxu0 0.0
      %426 = vmatpush1.msra.mxu0 0.0
      %427 = vmatprep.subr.mxu0 0.0
      %428 = vmatpush1.msra.mxu0 0.0
      %429 = vmatprep.subr.mxu0 0.0
      %430 = vmatpush1.msra.mxu0 0.0
      %431 = vmatprep.subr.mxu0 0.0
      %432 = vmatpush1.msra.mxu0 0.0
      %433 = vmatprep.subr.mxu0 0.0
      %434 = vmatpush1.msra.mxu0 0.0
      %435 = vmatprep.subr.mxu0 0.0
      %436 = vmatpush1.msra.mxu0 0.0
      %437 = vmatprep.subr.mxu0 0.0
      %438 = vmatpush1.msra.mxu0 0.0
      %439 = vmatprep.subr.mxu0 0.0
      %440 = vmatpush1.msra.mxu0 0.0
      %441 = vmatprep.subr.mxu0 0.0
      %442 = vmatpush1.msra.mxu0 0.0
      %443 = vmatprep.subr.mxu0 0.0
      %444 = vmatpush1.msra.mxu0 0.0
      %445 = vmatprep.subr.mxu0 0.0
      %446 = vmatpush1.msra.mxu0 0.0
      %447 = vmatprep.subr.mxu0 0.0
      %448 = vmatpush1.msra.mxu0 0.0
      %449 = vmatprep.subr.mxu0 0.0
      %450 = vmatpush1.msra.mxu0 0.0
      %451 = vmatprep.subr.mxu0 0.0
      %452 = vmatpush1.msra.mxu0 0.0
      %453 = vmatprep.subr.mxu0 0.0
      %454 = vmatpush1.msra.mxu0 0.0
      %455 = vmatprep.subr.mxu0 0.0
      %456 = vmatpush1.msra.mxu0 0.0
      %457 = vmatprep.subr.mxu0 0.0
      %458 = vmatpush1.msra.mxu0 0.0
      %459 = vmatprep.subr.mxu0 0.0
      %460 = vmatpush1.msra.mxu0 0.0
      %461 = vmatprep.subr.mxu0 0.0
      %462 = vmatpush1.msra.mxu0 0.0
      %463 = vmatprep.subr.mxu0 0.0
      %464 = vmatpush1.msra.mxu0 0.0
      %465 = vmatprep.subr.mxu0 0.0
      %466 = vmatpush1.msra.mxu0 0.0
      %467 = vmatprep.subr.mxu0 0.0
      %468 = vmatpush1.msra.mxu0 0.0
      %469 = vmatprep.subr.mxu0 0.0
      %470 = vmatpush1.msra.mxu0 0.0
      %471 = vmatprep.subr.mxu0 0.0
      %472 = vmatpush1.msra.mxu0 0.0
      %473 = vmatprep.subr.mxu0 0.0
      %474 = vmatpush1.msra.mxu0 0.0
      %475 = vmatprep.subr.mxu0 0.0
      %476 = vmatpush1.msra.mxu0 0.0
      %477 = vmatprep.subr.mxu0 0.0
      %478 = vmatpush1.msra.mxu0 0.0
      %479 = vmatprep.mubr.f32.mxu0 0.0
      %480 = vmatmul.mubr.f32.gmra.mrb[0].mxu0 %v413
      %v481 = vpop.f32.mrb[0].mxu0
      %v482 = vadd.f32 0.0, %v481
      %v483 = vpop.f32.mrb[0].mxu0
      %v484 = vadd.f32 0.0, %v483
      %485 = vdwg.mxu0
      %v486 = vld [vmem:[%s314] sm:$0x3f]
      %v488 = vsel %vm334, %v486, 0
      %490 = vmatprep.subr.mxu0 %v407
      %491 = vmatpush1.msra.mxu0 %v405
      %492 = vmatprep.subr.mxu0 0.0
      %493 = vmatpush1.msra.mxu0 0.0
      %494 = vmatprep.subr.mxu0 0.0
      %495 = vmatpush1.msra.mxu0 0.0
      %496 = vmatprep.subr.mxu0 0.0
      %497 = vmatpush1.msra.mxu0 0.0
      %498 = vmatprep.subr.mxu0 0.0
      %499 = vmatpush1.msra.mxu0 0.0
      %500 = vmatprep.subr.mxu0 0.0
      %501 = vmatpush1.msra.mxu0 0.0
      %502 = vmatprep.subr.mxu0 0.0
      %503 = vmatpush1.msra.mxu0 0.0
      %504 = vmatprep.subr.mxu0 0.0
      %505 = vmatpush1.msra.mxu0 0.0
      %506 = vmatprep.subr.mxu0 0.0
      %507 = vmatpush1.msra.mxu0 0.0
      %508 = vmatprep.subr.mxu0 0.0
      %509 = vmatpush1.msra.mxu0 0.0
      %510 = vmatprep.subr.mxu0 0.0
      %511 = vmatpush1.msra.mxu0 0.0
      %512 = vmatprep.subr.mxu0 0.0
      %513 = vmatpush1.msra.mxu0 0.0
      %514 = vmatprep.subr.mxu0 0.0
      %515 = vmatpush1.msra.mxu0 0.0
      %516 = vmatprep.subr.mxu0 0.0
      %517 = vmatpush1.msra.mxu0 0.0
      %518 = vmatprep.subr.mxu0 0.0
      %519 = vmatpush1.msra.mxu0 0.0
      %520 = vmatprep.subr.mxu0 0.0
      %521 = vmatpush1.msra.mxu0 0.0
      %522 = vmatprep.subr.mxu0 0.0
      %523 = vmatpush1.msra.mxu0 0.0
      %524 = vmatprep.subr.mxu0 0.0
      %525 = vmatpush1.msra.mxu0 0.0
      %526 = vmatprep.subr.mxu0 0.0
      %527 = vmatpush1.msra.mxu0 0.0
      %528 = vmatprep.subr.mxu0 0.0
      %529 = vmatpush1.msra.mxu0 0.0
      %530 = vmatprep.subr.mxu0 0.0
      %531 = vmatpush1.msra.mxu0 0.0
      %532 = vmatprep.subr.mxu0 0.0
      %533 = vmatpush1.msra.mxu0 0.0
      %534 = vmatprep.subr.mxu0 0.0
      %535 = vmatpush1.msra.mxu0 0.0
      %536 = vmatprep.subr.mxu0 0.0
      %537 = vmatpush1.msra.mxu0 0.0
      %538 = vmatprep.subr.mxu0 0.0
      %539 = vmatpush1.msra.mxu0 0.0
      %540 = vmatprep.subr.mxu0 0.0
      %541 = vmatpush1.msra.mxu0 0.0
      %542 = vmatprep.subr.mxu0 0.0
      %543 = vmatpush1.msra.mxu0 0.0
      %544 = vmatprep.subr.mxu0 0.0
      %545 = vmatpush1.msra.mxu0 0.0
      %546 = vmatprep.subr.mxu0 0.0
      %547 = vmatpush1.msra.mxu0 0.0
      %548 = vmatprep.subr.mxu0 0.0
      %549 = vmatpush1.msra.mxu0 0.0
      %550 = vmatprep.subr.mxu0 0.0
      %551 = vmatpush1.msra.mxu0 0.0
      %552 = vmatprep.subr.mxu0 0.0
      %553 = vmatpush1.msra.mxu0 0.0
      %554 = vmatprep.mubr.f32.mxu0 0.0
      %555 = vmatmul.mubr.f32.gmra.mrb[0].mxu0 %v488
      %v556 = vpop.f32.mrb[0].mxu0
      %v557 = vadd.f32 0.0, %v556
      %v558 = vpop.f32.mrb[0].mxu0
      %v559 = vadd.f32 0.0, %v558
      %560 = vdwg.mxu0
      %v561 = vmul.f32 %v482, %v557
      %v562 = vmul.f32 %v484, %v559
      %v563 = vld [vmem:[%s5] sm:$0x3f]
      %565 = vset.pattern.permute.xlu0 0
      %566 = vperm.xlu0 %565, %v563
      %v567 = vpop.permute.xlu0 %566
      %v569 = vadd.f32 %v561, %v567
      %v570 = vadd.f32 %v562, %v567
      %571 = vst [vmem:[%s323 + $0x10] sm:$0x3f] %v569
      %572 = vst [vmem:[%s323 + $0x18] sm:$0x3f] %v570
      %s573 = smul.u32 2, %s22
      %p574 = scmp.lt.s32.totalorder %s21, 1
      %s575 = scalar_select %p574, %s21, 1
      %p576 = scmp.lt.s32.totalorder %s573, 1
      %s577 = scalar_select %p576, %s573, 1
      %s578 = smul.addr %s575, 4
      %s579 = sadd.s32 %s577, %s578
      %s580 = smul.addr %s579, 8
      %s581 = scalar_lea.vmem %s6, %s580
      // Predicated region
      $region45: #{a_call__.1} parent=43 // pred_check
        %p582 = pneg %p192
      $region46: #{a_call__.1} parent=43 // pred_check_branch
        %584 = sbr.rel (%p582) target = $region48
      $region47: #{a_call__.1} parent=43 // pred_region
        %s585 = smul.u32 2, %s22
      $region48: #{a_call__.1} parent=43 // pred_fallthru
        _
    $region44: #{a_call__.1} parent=5 // pred_fallthru
      _
    %p586 = scmp.le.s32.totalorder 2, %s12
    // Predicated region
    $region49: #{a_call__.1} parent=5 // pred_check
      %p587 = pneg %p586
    $region50: #{a_call__.1} parent=5 // pred_check_branch
      %589 = sbr.rel (%p587) target = $region52
    $region51: #{a_call__.1} parent=5 // pred_region
      %s590 = ssub.s32 %s12, 2
      // Predicated region
      $region53: #{a_call__.1} parent=51 // pred_check
        %p591 = pneg %p198
      $region54: #{a_call__.1} parent=51 // pred_check_branch
        %593 = sbr.rel (%p591) target = $region56
      $region55: #{a_call__.1} parent=51 // pred_region
        %s594 = smul.u32 2, %s24
        %p595 = scmp.lt.s32.totalorder %s23, 1
        %s596 = scalar_select %p595, %s23, 1
        %p597 = scmp.lt.s32.totalorder %s594, 1
        %s598 = scalar_select %p597, %s594, 1
        %s599 = smul.addr %s596, 4
        %s600 = sadd.s32 %s598, %s599
        %s601 = smul.addr %s600, 8
        %s602 = scalar_lea.vmem %s6, %s601
      $region56: #{a_call__.1} parent=51 // pred_fallthru
        _
    $region52: #{a_call__.1} parent=5 // pred_fallthru
      _
  $region6: #{a_call__.1} parent=0 // loop_footer
    %s16 = sadd.s32 1, %s12
  $region7: #{a_call__.1} parent=0 // loop_footer_branch
    %11 = sbr.rel target = $region3
  $region8: #{a_call__.1} parent=0 // loop_exit
    _

</llo_original>
